<compile_context>
chip_gen: v5e
topology: v5e:2x2
jax: 0.10.0
libtpu: 0.0.40
codegen_flags: <defaults>
</compile_context>

<pallas_src>
import math
import functools

import jax
import jax.numpy as jnp
import numpy as np
from jax.experimental import pallas as pl
from jax.experimental.pallas import tpu as pltpu


def _fusion_kernel(gnn_ref, w_ref, b_ref, out_ref, *, seq_len):
    # (bt, G) @ (G, H) + (1, H) -> (bt, H): the composed
    # key_proj -> v in-projection -> out-projection map, one row per batch element.
    row = (jnp.dot(gnn_ref[...], w_ref[...], preferred_element_type=jnp.float32)
           + b_ref[...])
    # Uniform-softmax attention (identical K/V rows) -> this row IS the attention
    # output at every sequence position.  Tile along lanes into a (bt, S*H) slab
    # (>= 128 lanes -> unmasked stores); the wrapper reshapes back to (B, S, H).
    out_ref[...] = jnp.tile(row, (1, seq_len)).astype(out_ref.dtype)


def _pick_batch_block(B, G, SH, *, budget_bytes=4 << 20):
    """Choose (bt, padded_B).

    bt % 8 == 0 (or bt == B for tiny B) to satisfy the (8,128) block rule; keep the
    double-buffered in+out pipeline blocks under ~4 MiB (comfortable even under v5e's
    16 MiB scoped-VMEM default); prefer >= 4 grid steps so v7x's two TensorCores both
    get work and the pipeline has depth, while taking the largest bt that still does.
    """
    if B <= 8:
        return B, B
    padded_b = -(-B // 8) * 8

    def fits(bt):
        return 2 * bt * (G + SH) * 4 <= budget_bytes   # 2x double-buffer, f32

    cands = [bt for bt in range(8, padded_b + 1, 8) if padded_b % bt == 0 and fits(bt)]
    if not cands:
        cands = [8]
    for min_steps in (4, 2, 1):
        ok = [bt for bt in cands if padded_b // bt >= min_steps]
        if ok:
            return max(ok), padded_b
    return cands[0], padded_b


def spatio_temporal_fusion(memory, gnn_feats, params, *, num_heads=None):
    """Forward of SpatioTemporalFusion. `memory` only determines the output sequence
    length (the attention output is mathematically independent of its values because
    keys/values are a single repeated row per batch element); `num_heads` is accepted
    for API parity but does not change the collapsed result."""
    del num_heads
    B, S, H = memory.shape
    G = gnn_feats.shape[-1]

    # ---- Host-side weight composition (done once, outside the kernel) -------------
    # chain:  x(G) --key_proj--> (H) --v in-proj--> (H) --out-proj--> (H)
    w_in, b_in = params["w_in"], params["b_in"]
    wv_i_t = w_in[2 * H:3 * H].T                     # (H, H)   v in-proj, transposed
    bv_i = b_in[:, 2 * H:3 * H]                      # (1, H)
    w_out_t = params["w_out"].T                      # (H, H)
    wk_p_t = params["wk_p"].T                        # (G, H)
    bk_p = params["bk_p"]                            # (1, H)

    w_fused = wk_p_t @ wv_i_t @ w_out_t              # (G, H)
    b_fused = (bk_p @ wv_i_t + bv_i) @ w_out_t + params["b_out"]   # (1, H)
    w_fused = w_fused.astype(jnp.float32)
    b_fused = b_fused.astype(jnp.float32)

    # ---- Batch blocking / padding --------------------------------------------------
    bt, padded_b = _pick_batch_block(B, G, S * H)
    gnn = gnn_feats.astype(jnp.float32)
    if padded_b != B:
        gnn = jnp.pad(gnn, ((0, padded_b - B), (0, 0)))

    kernel = functools.partial(_fusion_kernel, seq_len=S)
    full = lambda shape: pl.BlockSpec(shape, lambda i: (0, 0))

    out_flat = pl.pallas_call(
        kernel,
        out_shape=jax.ShapeDtypeStruct((padded_b, S * H), jnp.float32),
        grid_spec=pltpu.PrefetchScalarGridSpec(
            num_scalar_prefetch=0,
            grid=(padded_b // bt,),
            in_specs=[
                pl.BlockSpec((bt, G), lambda i: (i, 0)),   # gnn_feats block
                full((G, H)),                              # fused weight
                full((1, H)),                              # fused bias
            ],
            out_specs=pl.BlockSpec((bt, S * H), lambda i: (i, 0)),
        ),
        compiler_params=pltpu.CompilerParams(
            dimension_semantics=("parallel",),
        ),
    )(gnn, w_fused, b_fused)

    return out_flat[:B].reshape(B, S, H)


def _reference(memory, gnn_feats, params, *, num_heads):
    """Plain-JAX reference mirroring nn.MultiheadAttention forward semantics
    (full query path, per-head softmax) — validates the uniform-softmax collapse."""
    B, S, H = memory.shape
    d = H // num_heads
    q = memory @ params["wq_p"].T + params["bq_p"][0]
    kb = gnn_feats @ params["wk_p"].T + params["bk_p"][0]
    keys = jnp.broadcast_to(kb[:, None, :], (B, S, H))

    w_in, b_in = params["w_in"], params["b_in"][0]
    qi = q @ w_in[:H].T + b_in[:H]
    ki = keys @ w_in[H:2 * H].T + b_in[H:2 * H]
    vi = keys @ w_in[2 * H:].T + b_in[2 * H:]

    def split(x):  # (B,S,H) -> (B,nh,S,d)
        return x.reshape(B, S, num_heads, d).transpose(0, 2, 1, 3)

    qh, kh, vh = split(qi), split(ki), split(vi)
    scores = jnp.einsum("bhqd,bhkd->bhqk", qh, kh) / math.sqrt(d)
    p = jax.nn.softmax(scores, axis=-1)
    o = jnp.einsum("bhqk,bhkd->bhqd", p, vh).transpose(0, 2, 1, 3).reshape(B, S, H)
    return o @ params["w_out"].T + params["b_out"][0]


if __name__ == "__main__":
    # Small config implied by the module: transformer_hidden=32, gps_hidden=16, heads=4.
    B, S, H, G, NH = 2, 8, 32, 16, 4

    key = jax.random.PRNGKey(0)
    ks = jax.random.split(key, 12)

    memory = jax.random.normal(ks[0], (B, S, H), jnp.float32)
    gnn_feats = jax.random.normal(ks[1], (B, G), jnp.float32)

    def init(k, shape, fan_in):
        bound = 1.0 / math.sqrt(fan_in)
        return jax.random.uniform(k, shape, jnp.float32, -bound, bound)

    params = {
        "wq_p":  init(ks[2], (H, H), H),        # query_proj (dead path, kept for the ref)
        "bq_p":  init(ks[3], (1, H), H),
        "wk_p":  init(ks[4], (H, G), G),        # key_proj
        "bk_p":  init(ks[5], (1, H), G),
        "w_in":  init(ks[6], (3 * H, H), H),    # packed q/k/v in-projection
        "b_in":  init(ks[7], (1, 3 * H), H),
        "w_out": init(ks[8], (H, H), H),        # MHA out-projection
        "b_out": init(ks[9], (1, H), H),
    }

    out = spatio_temporal_fusion(memory, gnn_feats, params, num_heads=NH)
    out = jax.block_until_ready(out)

    ref = _reference(memory, gnn_feats, params, num_heads=NH)
    np.testing.assert_allclose(np.asarray(out), np.asarray(ref), rtol=1e-4, atol=1e-4)

    print("KERNEL_OK")
</pallas_src>

<mosaic_0001>
module attributes {stable_mosaic.version = 11 : i64} {
  func.func @_fusion_kernel(%arg0: i32, %arg1: memref<2x16xf32, #tpu.memory_space<vmem>>, %arg2: memref<16x32xf32, #tpu.memory_space<vmem>>, %arg3: memref<1x32xf32, #tpu.memory_space<vmem>>, %arg4: memref<2x256xf32, #tpu.memory_space<vmem>>) attributes {dimension_semantics = [#tpu.dimension_semantics<parallel>], iteration_bounds = array<i64: 1>, scalar_prefetch = 0 : i64, scratch_operands = 0 : i64, tpu.core_type = #tpu.core_type<tc>, window_params = [{transform_indices = @transform_0, window_bounds = array<i64: 2, 16>}, {pipeline_mode = #tpu.pipeline_mode<synchronous>, transform_indices = @transform_1, window_bounds = array<i64: 16, 32>}, {pipeline_mode = #tpu.pipeline_mode<synchronous>, transform_indices = @transform_2, window_bounds = array<i64: 1, 32>}, {transform_indices = @transform_3, window_bounds = array<i64: 2, 256>}]} {
    %c0 = arith.constant 0 : index
    %c0_0 = arith.constant 0 : index
    %0 = vector.load %arg1[%c0, %c0_0] : memref<2x16xf32, #tpu.memory_space<vmem>>, vector<2x16xf32>
    %c0_1 = arith.constant 0 : index
    %c0_2 = arith.constant 0 : index
    %1 = vector.load %arg2[%c0_1, %c0_2] : memref<16x32xf32, #tpu.memory_space<vmem>>, vector<16x32xf32>
    %cst = arith.constant dense<0.000000e+00> : vector<2x32xf32>
    %2 = tpu.matmul %0, %1, %cst {dimension_numbers = #tpu.dot_dimension_numbers<[1], [0], [0], [1], [0, 0, 1, 1], [], []>} : vector<2x16xf32>, vector<16x32xf32>, vector<2x32xf32> -> vector<2x32xf32>
    %c0_3 = arith.constant 0 : index
    %c0_4 = arith.constant 0 : index
    %3 = vector.load %arg3[%c0_3, %c0_4] : memref<1x32xf32, #tpu.memory_space<vmem>>, vector<1x32xf32>
    %4 = vector.broadcast %3 : vector<1x32xf32> to vector<2x32xf32>
    %5 = arith.addf %2, %4 : vector<2x32xf32>
    %6 = tpu.concatenate %5, %5, %5, %5, %5, %5, %5, %5 in 1 : vector<2x32xf32>, vector<2x32xf32>, vector<2x32xf32>, vector<2x32xf32>, vector<2x32xf32>, vector<2x32xf32>, vector<2x32xf32>, vector<2x32xf32> -> vector<2x256xf32>
    %c0_5 = arith.constant 0 : index
    %c0_6 = arith.constant 0 : index
    %7 = vector.load %arg4[%c0_5, %c0_6] : memref<2x256xf32, #tpu.memory_space<vmem>>, vector<2x256xf32>
    tpu.vector_store %arg4[%c0_5, %c0_6], %6 {strides = array<i32>} : memref<2x256xf32, #tpu.memory_space<vmem>>, vector<2x256xf32>,
    return
  }
  func.func @transform_0(%arg0: i32) -> (i32, i32) {
    %c0_i32 = arith.constant 0 : i32
    %c0_i32_0 = arith.constant 0 : i32
    return %arg0, %c0_i32 : i32, i32
  }
  func.func @transform_1(%arg0: i32) -> (i32, i32) {
    %c0_i32 = arith.constant 0 : i32
    %c0_i32_0 = arith.constant 0 : i32
    %c0_i32_1 = arith.constant 0 : i32
    return %c0_i32, %c0_i32_0 : i32, i32
  }
  func.func @transform_2(%arg0: i32) -> (i32, i32) {
    %c0_i32 = arith.constant 0 : i32
    %c0_i32_0 = arith.constant 0 : i32
    %c0_i32_1 = arith.constant 0 : i32
    return %c0_i32, %c0_i32_0 : i32, i32
  }
  func.func @transform_3(%arg0: i32) -> (i32, i32) {
    %c0_i32 = arith.constant 0 : i32
    %c0_i32_0 = arith.constant 0 : i32
    return %arg0, %c0_i32 : i32, i32
  }
}

</mosaic_0001>

<llo_original>
// kernel: tpu_custom_call.1
$region0: #{tpu_custom_call.1}
  #allocation0 [shape = 'u32[]', space=smem, size = 0x4, offset = 0x4, fixed_abs, tag = 'smem constant byte address 0x4 - core index']
  #allocation1 [shape = 'u32[72,128]{1,0:T(1,128)}', space=vmem, size = 0x9000, scoped, tag = 'internal scratch']
  %s0 = inlined_call_operand.hbm [shape: f32[2,16], index: 0, kind: input, shape index: {}]
  %s1 = inlined_call_operand.hbm [shape: f32[16,32], index: 1, kind: input, shape index: {}]
  %s2 = inlined_call_operand.vmem [shape: f32[1,32], index: 2, kind: input, shape index: {}]
  %s3 = inlined_call_operand.hbm [shape: f32[2,256], index: 3, kind: output, shape index: {}]
  %s4 = sld [smem:[#allocation0]]
  $region30: #{tpu_custom_call.1} parent=0
    _
  %s6 = ssub.s32 1, %s4
  %s7 = scalar_select 0, %s6, %s4
  $region1: #{tpu_custom_call.1} parent=0
    #allocation2 [shape = 'u8[1024]{0}', space=vmem, size = 0x400, scoped, tag = 'input window, operand 0, single buffered']
    #allocation3 [shape = 's32[1]{0}', space=sflag, size = 0x4, scoped, tag = 'scoped memory for tpu_custom_call.1']
    #allocation4 [shape = 's32[1]{0}', space=sflag, size = 0x4, scoped, tag = 'scoped memory for tpu_custom_call.1']
    #allocation5 [shape = 'u8[8192]{0}', space=vmem, size = 0x2000, scoped, tag = 'input window, operand 1, single buffered']
    #allocation6 [shape = 's32[1]{0}', space=sflag, size = 0x4, scoped, tag = 'scoped memory for tpu_custom_call.1']
    #allocation7 [shape = 'u8[2048]{0}', space=vmem, size = 0x800, scoped, tag = 'output window, operand 0, single buffered']
    %8 = vsyncpa [#allocation3], 0
    %9 = vsyncpa [#allocation6], 0
    %10 = vsyncpa [#allocation4], 0
    // Predicated region
    $region2: #{tpu_custom_call.1} parent=1 // pred_check
      _
    $region3: #{tpu_custom_call.1} parent=1 // pred_check_branch
      %12 = sbr.rel (0) target = $region5
    $region4: #{tpu_custom_call.1} parent=1 // pred_region
      %14 = vsyncadd [#allocation3], 0
      %s16 = sshll.u32 %s0, 4
      %s17 = int_to_ptr.hbm [resolvable:$true] %s16
      %s18 = sshll.u32 [#allocation2], 4
      %s19 = int_to_ptr.vmem [resolvable:$true] %s18
      %21 = dma.hbm_to_vmem [thread:$0]  %s17, 32, %s19, [#allocation3]
    $region5: #{tpu_custom_call.1} parent=1 // pred_fallthru
      _
    // Predicated region
    $region6: #{tpu_custom_call.1} parent=1 // pred_check
      _
    $region7: #{tpu_custom_call.1} parent=1 // pred_check_branch
      %23 = sbr.rel (0) target = $region9
    $region8: #{tpu_custom_call.1} parent=1 // pred_region
      %25 = vsyncadd [#allocation6], 0
      %s26 = sshll.u32 %s1, 4
      %s27 = int_to_ptr.hbm [resolvable:$true] %s26
      %s28 = sshll.u32 [#allocation5], 4
      %s29 = int_to_ptr.vmem [resolvable:$true] %s28
      %34 = dma.hbm_to_vmem [thread:$0]  %s27, 256, %s29, [#allocation6], 128, 128, 8
    $region9: #{tpu_custom_call.1} parent=1 // pred_fallthru
      _
    // Predicated region
    $region10: #{tpu_custom_call.1} parent=1 // pred_check
      _
    $region11: #{tpu_custom_call.1} parent=1 // pred_check_branch
      %36 = sbr.rel (0) target = $region13
    $region12: #{tpu_custom_call.1} parent=1 // pred_region
      _
    $region13: #{tpu_custom_call.1} parent=1 // pred_fallthru
      _
    // Predicated region
    $region14: #{tpu_custom_call.1} parent=1 // pred_check
      _
    $region15: #{tpu_custom_call.1} parent=1 // pred_check_branch
      %38 = sbr.rel (0) target = $region17
    $region16: #{tpu_custom_call.1} parent=1 // pred_region
      %40 = dma.done [#allocation3], 32
    $region17: #{tpu_custom_call.1} parent=1 // pred_fallthru
      _
    // Predicated region
    $region18: #{tpu_custom_call.1} parent=1 // pred_check
      _
    $region19: #{tpu_custom_call.1} parent=1 // pred_check_branch
      %42 = sbr.rel (0) target = $region21
    $region20: #{tpu_custom_call.1} parent=1 // pred_region
      %44 = dma.done [#allocation6], 256
    $region21: #{tpu_custom_call.1} parent=1 // pred_fallthru
      _
    %v45 = vld [vmem:[#allocation2] sm:$0x3]
    %v46 = vld [vmem:[#allocation5] sm:$0xff]
    %v47 = vld [vmem:[#allocation5 + $0x8] sm:$0xff]
    %v48 = vld [vmem:[%s2] sm:$0x1]
    %v50 = vperm.slane %v48, 0
    %vm52 = vcmask 130048
    %v54 = vsel %vm52, %v45, 0
    %56 = vmatpush.msra.mxu0 0.0
    %57 = vmatpush.msra.mxu0 0.0
    %58 = vmatpush.msra.mxu0 0.0
    %59 = vmatpush.msra.mxu0 0.0
    %60 = vmatpush.msra.mxu0 0.0
    %61 = vmatpush.msra.mxu0 0.0
    %62 = vmatpush.msra.mxu0 0.0
    %63 = vmatpush.msra.mxu0 0.0
    %64 = vmatpush.msra.mxu0 0.0
    %65 = vmatpush.msra.mxu0 0.0
    %66 = vmatpush.msra.mxu0 0.0
    %67 = vmatpush.msra.mxu0 0.0
    %68 = vmatpush.msra.mxu0 0.0
    %69 = vmatpush.msra.mxu0 0.0
    %70 = vmatpush.msra.mxu0 %v47
    %71 = vmatpush.msra.mxu0 %v46
    %72 = vmatmul.f32.gmra.mxu0 %v54
    %v73 = vpop.f32.mrf.mxu0
    %v74 = vadd.f32 %v50, %v73
    %75 = vdwg.mxu0
    %77 = vrot.lane.b32.xlu0 %v74, 32
    %v78 = vpop.permute.xlu0 %77
    %80 = vrot.lane.b32.xlu0 %v74, 64
    %v81 = vpop.permute.xlu0 %80
    %83 = vrot.lane.b32.xlu0 %v74, 96
    %v84 = vpop.permute.xlu0 %83
    %vm86 = vcmask 261120
    %v87 = vsel %vm86, %v74, %v78
    %vm88 = vcmask 523264
    %v89 = vsel %vm88, %v87, %v81
    %vm90 = vcmask 785408
    %v91 = vsel %vm90, %v89, %v84
    %v93 = vrot.slane %v91, 6
    %vm94 = vcmask 1041408
    %v95 = vsel %vm94, %v91, %v93
    %97 = vst [vmem:[#allocation7] sm:$0xf] %v95
    // Predicated region
    $region22: #{tpu_custom_call.1} parent=1 // pred_check
      _
    $region23: #{tpu_custom_call.1} parent=1 // pred_check_branch
      %99 = sbr.rel (0) target = $region25
    $region24: #{tpu_custom_call.1} parent=1 // pred_region
      %101 = vsyncadd [#allocation4], 0
      %s103 = sshll.u32 [#allocation7], 4
      %s104 = int_to_ptr.vmem [resolvable:$true] %s103
      %s105 = sshll.u32 %s3, 4
      %s106 = int_to_ptr.hbm [resolvable:$true] %s105
      %108 = dma.vmem_to_hbm [thread:$0]  %s104, 64, %s106, [#allocation4]
    $region25: #{tpu_custom_call.1} parent=1 // pred_fallthru
      _
    // Predicated region
    $region26: #{tpu_custom_call.1} parent=1 // pred_check
      _
    $region27: #{tpu_custom_call.1} parent=1 // pred_check_branch
      %110 = sbr.rel (0) target = $region29
    $region28: #{tpu_custom_call.1} parent=1 // pred_region
      %112 = dma.done [#allocation4], 64
    $region29: #{tpu_custom_call.1} parent=1 // pred_fallthru
      _
    %113 = vsyncpa [#allocation3], 1
    %114 = vsyncpa [#allocation6], 1
    %115 = vsyncpa [#allocation4], 1

</llo_original>
